<compile_context>
chip_gen: v5e
topology: v5e:2x2
jax: 0.10.0
libtpu: 0.0.40
codegen_flags: <defaults>
</compile_context>

<pallas_src>
import functools

import jax
import jax.numpy as jnp
from jax.experimental import pallas as pl
from jax.experimental.pallas import tpu as pltpu

NUM_CLASSES = 10
LANE = 128


def _round_up(n, m):
    return ((n + m - 1) // m) * m


def combine_kernel(x_ref, w_ref, b_ref, wg_ref, out_ref, *, nc):
    # One fused matmul. Columns [0:nc]  -> fc-folded benign term (x @ W_eff)
    #                   column  [nc]    -> binary logit difference (gate logit)
    #                   columns [nc+1:] -> zero padding (lane-dense output)
    y = jnp.dot(x_ref[...], w_ref[...],
                preferred_element_type=jnp.float32) + b_ref[...]

    d = y[:, nc:nc + 1]                                   # [TB, 1]  l1 - l0
    # softmax([l0,l1])[:,1] == sigmoid(l1-l0); gate = relu(sigmoid(d) - 0.5)
    gate = jnp.maximum(1.0 / (1.0 + jnp.exp(-d)) - 0.5, 0.0)

    # Epilogue is a single FMA-shaped expression; wg is zero outside [0:nc],
    # so padded/gate columns carry no garbage that survives the final slice.
    out_ref[...] = y + gate * wg_ref[...]


def fold_params(params, *, matmul_dtype):
    """Host/JIT-side algebraic folding (free under jit, exact in f32)."""
    wben, bben, wbin, bbin, wfc, bfc = params
    nc = wfc.shape[1]
    d = wben.shape[0]
    p = max(LANE, _round_up(nc + 1, LANE))                # lane-dense width

    w_main = wfc[:nc, :]                                  # [NC, NC]
    w_gate = wfc[nc:nc + 1, :]                            # [1, NC]
    w_eff = wben @ w_main                                 # [D, NC]
    b_eff = bben @ w_main + bfc                           # [1, NC]
    wdiff = (wbin[:, 1] - wbin[:, 0])[:, None]            # [D, 1]
    bdiff = (bbin[:, 1] - bbin[:, 0]).reshape(1, 1)       # [1, 1]

    w_cat = (jnp.zeros((d, p), jnp.float32)
             .at[:, :nc].set(w_eff).at[:, nc:nc + 1].set(wdiff))
    b_cat = (jnp.zeros((1, p), jnp.float32)
             .at[:, :nc].set(b_eff).at[:, nc:nc + 1].set(bdiff))
    wg_cat = jnp.zeros((1, p), jnp.float32).at[:, :nc].set(w_gate)
    return w_cat.astype(matmul_dtype), b_cat, wg_cat, nc, p


def combine_forward(x_nchw, params, *, use_bf16=True, tb=256):
    """x_nchw: [B, C, H, W]; params: (wben, bben, wbin, bbin, wfc, bfc)."""
    b = x_nchw.shape[0]
    x2d = x_nchw.reshape(b, -1)
    d = x2d.shape[1]
    matmul_dtype = jnp.bfloat16 if use_bf16 else jnp.float32

    w_cat, b_cat, wg_cat, nc, p = fold_params(params, matmul_dtype=matmul_dtype)

    # Batch tile: multiple of 8 sublanes, capped at `tb`; pad batch to tiles.
    tb_eff = min(tb, _round_up(b, 8))
    b_pad = _round_up(b, tb_eff)
    x_pad = (jnp.zeros((b_pad, d), matmul_dtype)
             .at[:b, :].set(x2d.astype(matmul_dtype)))

    kernel = functools.partial(combine_kernel, nc=nc)
    out = pl.pallas_call(
        kernel,
        out_shape=jax.ShapeDtypeStruct((b_pad, p), jnp.float32),
        grid_spec=pltpu.PrefetchScalarGridSpec(
            num_scalar_prefetch=0,
            grid=(b_pad // tb_eff,),
            in_specs=[
                pl.BlockSpec((tb_eff, d), lambda i: (i, 0)),   # x tile (pipelined)
                pl.BlockSpec((d, p), lambda i: (0, 0)),        # fused weights (resident)
                pl.BlockSpec((1, p), lambda i: (0, 0)),        # fused bias (resident)
                pl.BlockSpec((1, p), lambda i: (0, 0)),        # gate weight row (resident)
            ],
            out_specs=pl.BlockSpec((tb_eff, p), lambda i: (i, 0)),
        ),
        compiler_params=pltpu.CompilerParams(
            dimension_semantics=("parallel",),
        ),
    )(x_pad, w_cat, b_cat, wg_cat)
    return out[:b, :nc]


def make_params(key, d, num_classes):
    ks = jax.random.split(key, 6)
    scale = 1.0 / jnp.sqrt(jnp.float32(d))
    wben = jax.random.normal(ks[0], (d, num_classes), jnp.float32) * scale
    bben = jax.random.normal(ks[1], (1, num_classes), jnp.float32) * 0.1
    wbin = jax.random.normal(ks[2], (d, 2), jnp.float32) * scale
    bbin = jax.random.normal(ks[3], (1, 2), jnp.float32) * 0.1
    # nn.Linear(num_classes + 1, num_classes) stored as [in, out]
    wfc = (jax.random.normal(ks[4], (num_classes + 1, num_classes), jnp.float32)
           / jnp.sqrt(jnp.float32(num_classes + 1)))
    bfc = jax.random.normal(ks[5], (1, num_classes), jnp.float32) * 0.1
    return wben, bben, wbin, bbin, wfc, bfc


def reference_forward(x_nchw, params):
    """Plain-JAX reference mirroring the PyTorch forward (incl. the concat)."""
    wben, bben, wbin, bbin, wfc, bfc = params
    b = x_nchw.shape[0]
    x = x_nchw.reshape(b, -1).astype(jnp.float32)
    bin_logits = x @ wbin + bbin
    bin_probs = jax.nn.softmax(bin_logits, axis=-1)
    bin_sign = jax.nn.relu(bin_probs[:, 1:2] - 0.5)
    ben_logits = x @ wben + bben
    cat = jnp.concatenate([ben_logits, bin_sign], axis=1)
    return cat @ wfc + bfc


if __name__ == "__main__":
    key = jax.random.PRNGKey(0)
    k_x, k_p = jax.random.split(key)

    B, C, H, W = 2, 4, 16, 16
    D = C * H * W

    x = jax.random.normal(k_x, (B, C, H, W), jnp.float32)
    params = make_params(k_p, D, NUM_CLASSES)

    ref = reference_forward(x, params)

    # f32 path: algebraically exact rewrite (folded fc + sigmoid gate).
    out_f32 = jax.block_until_ready(combine_forward(x, params, use_bf16=False))
    assert out_f32.shape == (B, NUM_CLASSES)
    assert jnp.allclose(out_f32, ref, atol=1e-4, rtol=1e-4)

    # bf16 matmul-input path (halved HBM bytes for x): looser tolerance.
    out_bf16 = jax.block_until_ready(combine_forward(x, params, use_bf16=True))
    assert out_bf16.shape == (B, NUM_CLASSES)
    assert jnp.allclose(out_bf16, ref, atol=3e-2, rtol=3e-2)

    print("KERNEL_OK")
</pallas_src>

<mosaic_0001>
module attributes {stable_mosaic.version = 11 : i64} {
  func.func @combine_kernel(%arg0: i32, %arg1: memref<8x1024xf32, #tpu.memory_space<vmem>>, %arg2: memref<1024x128xf32, #tpu.memory_space<vmem>>, %arg3: memref<1x128xf32, #tpu.memory_space<vmem>>, %arg4: memref<1x128xf32, #tpu.memory_space<vmem>>, %arg5: memref<8x128xf32, #tpu.memory_space<vmem>>) attributes {dimension_semantics = [#tpu.dimension_semantics<parallel>], iteration_bounds = array<i64: 1>, scalar_prefetch = 0 : i64, scratch_operands = 0 : i64, tpu.core_type = #tpu.core_type<tc>, window_params = [{transform_indices = @transform_0, window_bounds = array<i64: 8, 1024>}, {pipeline_mode = #tpu.pipeline_mode<synchronous>, transform_indices = @transform_1, window_bounds = array<i64: 1024, 128>}, {pipeline_mode = #tpu.pipeline_mode<synchronous>, transform_indices = @transform_2, window_bounds = array<i64: 1, 128>}, {pipeline_mode = #tpu.pipeline_mode<synchronous>, transform_indices = @transform_3, window_bounds = array<i64: 1, 128>}, {transform_indices = @transform_4, window_bounds = array<i64: 8, 128>}]} {
    %c0 = arith.constant 0 : index
    %c0_0 = arith.constant 0 : index
    %0 = vector.load %arg1[%c0, %c0_0] : memref<8x1024xf32, #tpu.memory_space<vmem>>, vector<8x1024xf32>
    %c0_1 = arith.constant 0 : index
    %c0_2 = arith.constant 0 : index
    %1 = vector.load %arg2[%c0_1, %c0_2] : memref<1024x128xf32, #tpu.memory_space<vmem>>, vector<1024x128xf32>
    %cst = arith.constant dense<0.000000e+00> : vector<8x128xf32>
    %2 = tpu.matmul %0, %1, %cst {dimension_numbers = #tpu.dot_dimension_numbers<[1], [0], [0], [1], [0, 0, 1, 1], [], []>} : vector<8x1024xf32>, vector<1024x128xf32>, vector<8x128xf32> -> vector<8x128xf32>
    %c0_3 = arith.constant 0 : index
    %c0_4 = arith.constant 0 : index
    %3 = vector.load %arg3[%c0_3, %c0_4] : memref<1x128xf32, #tpu.memory_space<vmem>>, vector<1x128xf32>
    %4 = vector.broadcast %3 : vector<1x128xf32> to vector<8x128xf32>
    %5 = arith.addf %2, %4 : vector<8x128xf32>
    %6 = vector.extract_strided_slice %5 {offsets = [0, 10], sizes = [8, 1], strides = [1, 1]} : vector<8x128xf32> to vector<8x1xf32>
    %cst_5 = arith.constant 0.000000e+00 : f32
    %7 = vector.broadcast %cst_5 : f32 to vector<8x1xf32>
    %8 = arith.subf %7, %6 : vector<8x1xf32>
    %9 = math.exp %8 : vector<8x1xf32>
    %cst_6 = arith.constant 1.000000e+00 : f32
    %10 = vector.broadcast %cst_6 : f32 to vector<8x1xf32>
    %11 = arith.addf %10, %9 : vector<8x1xf32>
    %cst_7 = arith.constant 1.000000e+00 : f32
    %12 = vector.broadcast %cst_7 : f32 to vector<8x1xf32>
    %13 = arith.divf %12, %11 : vector<8x1xf32>
    %cst_8 = arith.constant 5.000000e-01 : f32
    %14 = vector.broadcast %cst_8 : f32 to vector<8x1xf32>
    %15 = arith.subf %13, %14 : vector<8x1xf32>
    %cst_9 = arith.constant 0.000000e+00 : f32
    %16 = vector.broadcast %cst_9 : f32 to vector<8x1xf32>
    %17 = arith.maximumf %15, %16 : vector<8x1xf32>
    %c0_10 = arith.constant 0 : index
    %c0_11 = arith.constant 0 : index
    %18 = vector.load %arg4[%c0_10, %c0_11] : memref<1x128xf32, #tpu.memory_space<vmem>>, vector<1x128xf32>
    %19 = vector.broadcast %17 : vector<8x1xf32> to vector<8x128xf32>
    %20 = vector.broadcast %18 : vector<1x128xf32> to vector<8x128xf32>
    %21 = arith.mulf %19, %20 : vector<8x128xf32>
    %22 = arith.addf %5, %21 : vector<8x128xf32>
    %c0_12 = arith.constant 0 : index
    %c0_13 = arith.constant 0 : index
    %23 = vector.load %arg5[%c0_12, %c0_13] : memref<8x128xf32, #tpu.memory_space<vmem>>, vector<8x128xf32>
    tpu.vector_store %arg5[%c0_12, %c0_13], %22 {strides = array<i32>} : memref<8x128xf32, #tpu.memory_space<vmem>>, vector<8x128xf32>,
    return
  }
  func.func @transform_0(%arg0: i32) -> (i32, i32) {
    %c0_i32 = arith.constant 0 : i32
    %c0_i32_0 = arith.constant 0 : i32
    return %arg0, %c0_i32 : i32, i32
  }
  func.func @transform_1(%arg0: i32) -> (i32, i32) {
    %c0_i32 = arith.constant 0 : i32
    %c0_i32_0 = arith.constant 0 : i32
    %c0_i32_1 = arith.constant 0 : i32
    return %c0_i32, %c0_i32_0 : i32, i32
  }
  func.func @transform_2(%arg0: i32) -> (i32, i32) {
    %c0_i32 = arith.constant 0 : i32
    %c0_i32_0 = arith.constant 0 : i32
    %c0_i32_1 = arith.constant 0 : i32
    return %c0_i32, %c0_i32_0 : i32, i32
  }
  func.func @transform_3(%arg0: i32) -> (i32, i32) {
    %c0_i32 = arith.constant 0 : i32
    %c0_i32_0 = arith.constant 0 : i32
    %c0_i32_1 = arith.constant 0 : i32
    return %c0_i32, %c0_i32_0 : i32, i32
  }
  func.func @transform_4(%arg0: i32) -> (i32, i32) {
    %c0_i32 = arith.constant 0 : i32
    %c0_i32_0 = arith.constant 0 : i32
    return %arg0, %c0_i32 : i32, i32
  }
}

</mosaic_0001>

<llo_original>
// kernel: tpu_custom_call.1
$region0: #{tpu_custom_call.1}
  #allocation0 [shape = 'u32[]', space=smem, size = 0x4, offset = 0x4, fixed_abs, tag = 'smem constant byte address 0x4 - core index']
  #allocation1 [shape = 'u32[72,128]{1,0:T(1,128)}', space=vmem, size = 0x9000, scoped, tag = 'internal scratch']
  %s0 = inlined_call_operand.hbm [shape: f32[8,1024], index: 0, kind: input, shape index: {}]
  %s1 = inlined_call_operand.hbm [shape: f32[1024,128], index: 1, kind: input, shape index: {}]
  %s2 = inlined_call_operand.vmem [shape: f32[1,128], index: 2, kind: input, shape index: {}]
  %s3 = inlined_call_operand.vmem [shape: f32[1,128], index: 3, kind: input, shape index: {}]
  %s4 = inlined_call_operand.hbm [shape: f32[8,128], index: 4, kind: output, shape index: {}]
  %s5 = sld [smem:[#allocation0]]
  $region34: #{tpu_custom_call.1} parent=0
    _
  %s7 = ssub.s32 1, %s5
  %s8 = scalar_select 0, %s7, %s5
  $region1: #{tpu_custom_call.1} parent=0
    #allocation2 [shape = 'u8[32768]{0}', space=vmem, size = 0x8000, scoped, tag = 'input window, operand 0, single buffered']
    #allocation3 [shape = 's32[1]{0}', space=sflag, size = 0x4, scoped, tag = 'scoped memory for tpu_custom_call.1']
    #allocation4 [shape = 's32[1]{0}', space=sflag, size = 0x4, scoped, tag = 'scoped memory for tpu_custom_call.1']
    #allocation5 [shape = 'u8[524288]{0}', space=vmem, size = 0x80000, scoped, tag = 'input window, operand 1, single buffered']
    #allocation6 [shape = 's32[1]{0}', space=sflag, size = 0x4, scoped, tag = 'scoped memory for tpu_custom_call.1']
    #allocation7 [shape = 'u8[4096]{0}', space=vmem, size = 0x1000, scoped, tag = 'output window, operand 0, single buffered']
    %9 = vsyncpa [#allocation3], 0
    %10 = vsyncpa [#allocation6], 0
    %11 = vsyncpa [#allocation4], 0
    // Predicated region
    $region2: #{tpu_custom_call.1} parent=1 // pred_check
      _
    $region3: #{tpu_custom_call.1} parent=1 // pred_check_branch
      %13 = sbr.rel (0) target = $region5
    $region4: #{tpu_custom_call.1} parent=1 // pred_region
      %15 = vsyncadd [#allocation3], 0
      %s17 = sshll.u32 %s0, 4
      %s18 = int_to_ptr.hbm [resolvable:$true] %s17
      %s19 = sshll.u32 [#allocation2], 4
      %s20 = int_to_ptr.vmem [resolvable:$true] %s19
      %22 = dma.hbm_to_vmem [thread:$0]  %s18, 1024, %s20, [#allocation3]
    $region5: #{tpu_custom_call.1} parent=1 // pred_fallthru
      _
    // Predicated region
    $region6: #{tpu_custom_call.1} parent=1 // pred_check
      _
    $region7: #{tpu_custom_call.1} parent=1 // pred_check_branch
      %24 = sbr.rel (0) target = $region9
    $region8: #{tpu_custom_call.1} parent=1 // pred_region
      %26 = vsyncadd [#allocation6], 0
      %s27 = sshll.u32 %s1, 4
      %s28 = int_to_ptr.hbm [resolvable:$true] %s27
      %s29 = sshll.u32 [#allocation5], 4
      %s30 = int_to_ptr.vmem [resolvable:$true] %s29
      %35 = dma.hbm_to_vmem [thread:$0]  %s28, 16384, %s30, [#allocation6], 128, 128, 8
    $region9: #{tpu_custom_call.1} parent=1 // pred_fallthru
      _
    // Predicated region
    $region10: #{tpu_custom_call.1} parent=1 // pred_check
      _
    $region11: #{tpu_custom_call.1} parent=1 // pred_check_branch
      %37 = sbr.rel (0) target = $region13
    $region12: #{tpu_custom_call.1} parent=1 // pred_region
      _
    $region13: #{tpu_custom_call.1} parent=1 // pred_fallthru
      _
    // Predicated region
    $region14: #{tpu_custom_call.1} parent=1 // pred_check
      _
    $region15: #{tpu_custom_call.1} parent=1 // pred_check_branch
      %39 = sbr.rel (0) target = $region17
    $region16: #{tpu_custom_call.1} parent=1 // pred_region
      _
    $region17: #{tpu_custom_call.1} parent=1 // pred_fallthru
      _
    // Predicated region
    $region18: #{tpu_custom_call.1} parent=1 // pred_check
      _
    $region19: #{tpu_custom_call.1} parent=1 // pred_check_branch
      %41 = sbr.rel (0) target = $region21
    $region20: #{tpu_custom_call.1} parent=1 // pred_region
      %43 = dma.done [#allocation3], 1024
    $region21: #{tpu_custom_call.1} parent=1 // pred_fallthru
      _
    // Predicated region
    $region22: #{tpu_custom_call.1} parent=1 // pred_check
      _
    $region23: #{tpu_custom_call.1} parent=1 // pred_check_branch
      %45 = sbr.rel (0) target = $region25
    $region24: #{tpu_custom_call.1} parent=1 // pred_region
      %47 = dma.done [#allocation6], 16384
    $region25: #{tpu_custom_call.1} parent=1 // pred_fallthru
      _
    %v48 = vld [vmem:[#allocation2] sm:$0xff]
    %v49 = vld [vmem:[#allocation2 + $0x8] sm:$0xff]
    %v50 = vld [vmem:[#allocation2 + $0x10] sm:$0xff]
    %v51 = vld [vmem:[#allocation2 + $0x18] sm:$0xff]
    %v52 = vld [vmem:[#allocation2 + $0x20] sm:$0xff]
    %v53 = vld [vmem:[#allocation2 + $0x28] sm:$0xff]
    %v54 = vld [vmem:[#allocation2 + $0x30] sm:$0xff]
    %v55 = vld [vmem:[#allocation2 + $0x38] sm:$0xff]
    %v56 = vld [vmem:[#allocation5] sm:$0xff]
    %v57 = vld [vmem:[#allocation5 + $0x8] sm:$0xff]
    %v58 = vld [vmem:[#allocation5 + $0x10] sm:$0xff]
    %v59 = vld [vmem:[#allocation5 + $0x18] sm:$0xff]
    %v60 = vld [vmem:[#allocation5 + $0x20] sm:$0xff]
    %v61 = vld [vmem:[#allocation5 + $0x28] sm:$0xff]
    %v62 = vld [vmem:[#allocation5 + $0x30] sm:$0xff]
    %v63 = vld [vmem:[#allocation5 + $0x38] sm:$0xff]
    %v64 = vld [vmem:[#allocation5 + $0x40] sm:$0xff]
    %v65 = vld [vmem:[#allocation5 + $0x48] sm:$0xff]
    %v66 = vld [vmem:[#allocation5 + $0x50] sm:$0xff]
    %v67 = vld [vmem:[#allocation5 + $0x58] sm:$0xff]
    %v68 = vld [vmem:[#allocation5 + $0x60] sm:$0xff]
    %v69 = vld [vmem:[#allocation5 + $0x68] sm:$0xff]
    %v70 = vld [vmem:[#allocation5 + $0x70] sm:$0xff]
    %v71 = vld [vmem:[#allocation5 + $0x78] sm:$0xff]
    %v72 = vld [vmem:[#allocation5 + $0x80] sm:$0xff]
    %v73 = vld [vmem:[#allocation5 + $0x88] sm:$0xff]
    %v74 = vld [vmem:[#allocation5 + $0x90] sm:$0xff]
    %v75 = vld [vmem:[#allocation5 + $0x98] sm:$0xff]
    %v76 = vld [vmem:[#allocation5 + $0xa0] sm:$0xff]
    %v77 = vld [vmem:[#allocation5 + $0xa8] sm:$0xff]
    %v78 = vld [vmem:[#allocation5 + $0xb0] sm:$0xff]
    %v79 = vld [vmem:[#allocation5 + $0xb8] sm:$0xff]
    %v80 = vld [vmem:[#allocation5 + $0xc0] sm:$0xff]
    %v81 = vld [vmem:[#allocation5 + $0xc8] sm:$0xff]
    %v82 = vld [vmem:[#allocation5 + $0xd0] sm:$0xff]
    %v83 = vld [vmem:[#allocation5 + $0xd8] sm:$0xff]
    %v84 = vld [vmem:[#allocation5 + $0xe0] sm:$0xff]
    %v85 = vld [vmem:[#allocation5 + $0xe8] sm:$0xff]
    %v86 = vld [vmem:[#allocation5 + $0xf0] sm:$0xff]
    %v87 = vld [vmem:[#allocation5 + $0xf8] sm:$0xff]
    %v88 = vld [vmem:[#allocation5 + $0x100] sm:$0xff]
    %v89 = vld [vmem:[#allocation5 + $0x108] sm:$0xff]
    %v90 = vld [vmem:[#allocation5 + $0x110] sm:$0xff]
    %v91 = vld [vmem:[#allocation5 + $0x118] sm:$0xff]
    %v92 = vld [vmem:[#allocation5 + $0x120] sm:$0xff]
    %v93 = vld [vmem:[#allocation5 + $0x128] sm:$0xff]
    %v94 = vld [vmem:[#allocation5 + $0x130] sm:$0xff]
    %v95 = vld [vmem:[#allocation5 + $0x138] sm:$0xff]
    %v96 = vld [vmem:[#allocation5 + $0x140] sm:$0xff]
    %v97 = vld [vmem:[#allocation5 + $0x148] sm:$0xff]
    %v98 = vld [vmem:[#allocation5 + $0x150] sm:$0xff]
    %v99 = vld [vmem:[#allocation5 + $0x158] sm:$0xff]
    %v100 = vld [vmem:[#allocation5 + $0x160] sm:$0xff]
    %v101 = vld [vmem:[#allocation5 + $0x168] sm:$0xff]
    %v102 = vld [vmem:[#allocation5 + $0x170] sm:$0xff]
    %v103 = vld [vmem:[#allocation5 + $0x178] sm:$0xff]
    %v104 = vld [vmem:[#allocation5 + $0x180] sm:$0xff]
    %v105 = vld [vmem:[#allocation5 + $0x188] sm:$0xff]
    %v106 = vld [vmem:[#allocation5 + $0x190] sm:$0xff]
    %v107 = vld [vmem:[#allocation5 + $0x198] sm:$0xff]
    %v108 = vld [vmem:[#allocation5 + $0x1a0] sm:$0xff]
    %v109 = vld [vmem:[#allocation5 + $0x1a8] sm:$0xff]
    %v110 = vld [vmem:[#allocation5 + $0x1b0] sm:$0xff]
    %v111 = vld [vmem:[#allocation5 + $0x1b8] sm:$0xff]
    %v112 = vld [vmem:[#allocation5 + $0x1c0] sm:$0xff]
    %v113 = vld [vmem:[#allocation5 + $0x1c8] sm:$0xff]
    %v114 = vld [vmem:[#allocation5 + $0x1d0] sm:$0xff]
    %v115 = vld [vmem:[#allocation5 + $0x1d8] sm:$0xff]
    %v116 = vld [vmem:[#allocation5 + $0x1e0] sm:$0xff]
    %v117 = vld [vmem:[#allocation5 + $0x1e8] sm:$0xff]
    %v118 = vld [vmem:[#allocation5 + $0x1f0] sm:$0xff]
    %v119 = vld [vmem:[#allocation5 + $0x1f8] sm:$0xff]
    %v120 = vld [vmem:[#allocation5 + $0x200] sm:$0xff]
    %v121 = vld [vmem:[#allocation5 + $0x208] sm:$0xff]
    %v122 = vld [vmem:[#allocation5 + $0x210] sm:$0xff]
    %v123 = vld [vmem:[#allocation5 + $0x218] sm:$0xff]
    %v124 = vld [vmem:[#allocation5 + $0x220] sm:$0xff]
    %v125 = vld [vmem:[#allocation5 + $0x228] sm:$0xff]
    %v126 = vld [vmem:[#allocation5 + $0x230] sm:$0xff]
    %v127 = vld [vmem:[#allocation5 + $0x238] sm:$0xff]
    %v128 = vld [vmem:[#allocation5 + $0x240] sm:$0xff]
    %v129 = vld [vmem:[#allocation5 + $0x248] sm:$0xff]
    %v130 = vld [vmem:[#allocation5 + $0x250] sm:$0xff]
    %v131 = vld [vmem:[#allocation5 + $0x258] sm:$0xff]
    %v132 = vld [vmem:[#allocation5 + $0x260] sm:$0xff]
    %v133 = vld [vmem:[#allocation5 + $0x268] sm:$0xff]
    %v134 = vld [vmem:[#allocation5 + $0x270] sm:$0xff]
    %v135 = vld [vmem:[#allocation5 + $0x278] sm:$0xff]
    %v136 = vld [vmem:[#allocation5 + $0x280] sm:$0xff]
    %v137 = vld [vmem:[#allocation5 + $0x288] sm:$0xff]
    %v138 = vld [vmem:[#allocation5 + $0x290] sm:$0xff]
    %v139 = vld [vmem:[#allocation5 + $0x298] sm:$0xff]
    %v140 = vld [vmem:[#allocation5 + $0x2a0] sm:$0xff]
    %v141 = vld [vmem:[#allocation5 + $0x2a8] sm:$0xff]
    %v142 = vld [vmem:[#allocation5 + $0x2b0] sm:$0xff]
    %v143 = vld [vmem:[#allocation5 + $0x2b8] sm:$0xff]
    %v144 = vld [vmem:[#allocation5 + $0x2c0] sm:$0xff]
    %v145 = vld [vmem:[#allocation5 + $0x2c8] sm:$0xff]
    %v146 = vld [vmem:[#allocation5 + $0x2d0] sm:$0xff]
    %v147 = vld [vmem:[#allocation5 + $0x2d8] sm:$0xff]
    %v148 = vld [vmem:[#allocation5 + $0x2e0] sm:$0xff]
    %v149 = vld [vmem:[#allocation5 + $0x2e8] sm:$0xff]
    %v150 = vld [vmem:[#allocation5 + $0x2f0] sm:$0xff]
    %v151 = vld [vmem:[#allocation5 + $0x2f8] sm:$0xff]
    %v152 = vld [vmem:[#allocation5 + $0x300] sm:$0xff]
    %v153 = vld [vmem:[#allocation5 + $0x308] sm:$0xff]
    %v154 = vld [vmem:[#allocation5 + $0x310] sm:$0xff]
    %v155 = vld [vmem:[#allocation5 + $0x318] sm:$0xff]
    %v156 = vld [vmem:[#allocation5 + $0x320] sm:$0xff]
    %v157 = vld [vmem:[#allocation5 + $0x328] sm:$0xff]
    %v158 = vld [vmem:[#allocation5 + $0x330] sm:$0xff]
    %v159 = vld [vmem:[#allocation5 + $0x338] sm:$0xff]
    %v160 = vld [vmem:[#allocation5 + $0x340] sm:$0xff]
    %v161 = vld [vmem:[#allocation5 + $0x348] sm:$0xff]
    %v162 = vld [vmem:[#allocation5 + $0x350] sm:$0xff]
    %v163 = vld [vmem:[#allocation5 + $0x358] sm:$0xff]
    %v164 = vld [vmem:[#allocation5 + $0x360] sm:$0xff]
    %v165 = vld [vmem:[#allocation5 + $0x368] sm:$0xff]
    %v166 = vld [vmem:[#allocation5 + $0x370] sm:$0xff]
    %v167 = vld [vmem:[#allocation5 + $0x378] sm:$0xff]
    %v168 = vld [vmem:[#allocation5 + $0x380] sm:$0xff]
    %v169 = vld [vmem:[#allocation5 + $0x388] sm:$0xff]
    %v170 = vld [vmem:[#allocation5 + $0x390] sm:$0xff]
    %v171 = vld [vmem:[#allocation5 + $0x398] sm:$0xff]
    %v172 = vld [vmem:[#allocation5 + $0x3a0] sm:$0xff]
    %v173 = vld [vmem:[#allocation5 + $0x3a8] sm:$0xff]
    %v174 = vld [vmem:[#allocation5 + $0x3b0] sm:$0xff]
    %v175 = vld [vmem:[#allocation5 + $0x3b8] sm:$0xff]
    %v176 = vld [vmem:[#allocation5 + $0x3c0] sm:$0xff]
    %v177 = vld [vmem:[#allocation5 + $0x3c8] sm:$0xff]
    %v178 = vld [vmem:[#allocation5 + $0x3d0] sm:$0xff]
    %v179 = vld [vmem:[#allocation5 + $0x3d8] sm:$0xff]
    %v180 = vld [vmem:[#allocation5 + $0x3e0] sm:$0xff]
    %v181 = vld [vmem:[#allocation5 + $0x3e8] sm:$0xff]
    %v182 = vld [vmem:[#allocation5 + $0x3f0] sm:$0xff]
    %v183 = vld [vmem:[#allocation5 + $0x3f8] sm:$0xff]
    %v184 = vld [vmem:[%s2] sm:$0x1]
    %v186 = vperm.slane %v184, 0
    %188 = vmatpush.msra.mxu0 %v71
    %189 = vmatpush.msra.mxu0 %v70
    %190 = vmatpush.msra.mxu0 %v69
    %191 = vmatpush.msra.mxu0 %v68
    %192 = vmatpush.msra.mxu0 %v67
    %193 = vmatpush.msra.mxu0 %v66
    %194 = vmatpush.msra.mxu0 %v65
    %195 = vmatpush.msra.mxu0 %v64
    %196 = vmatpush.msra.mxu0 %v63
    %197 = vmatpush.msra.mxu0 %v62
    %198 = vmatpush.msra.mxu0 %v61
    %199 = vmatpush.msra.mxu0 %v60
    %200 = vmatpush.msra.mxu0 %v59
    %201 = vmatpush.msra.mxu0 %v58
    %202 = vmatpush.msra.mxu0 %v57
    %203 = vmatpush.msra.mxu0 %v56
    %204 = vmatmul.f32.gmra.mxu0 %v48
    %v205 = vpop.f32.mrf.mxu0
    %v206 = vadd.f32 %v186, %v205
    %207 = vdwg.mxu0
    %208 = vmatpush.msra.mxu0 %v87
    %209 = vmatpush.msra.mxu0 %v86
    %210 = vmatpush.msra.mxu0 %v85
    %211 = vmatpush.msra.mxu0 %v84
    %212 = vmatpush.msra.mxu0 %v83
    %213 = vmatpush.msra.mxu0 %v82
    %214 = vmatpush.msra.mxu0 %v81
    %215 = vmatpush.msra.mxu0 %v80
    %216 = vmatpush.msra.mxu0 %v79
    %217 = vmatpush.msra.mxu0 %v78
    %218 = vmatpush.msra.mxu0 %v77
    %219 = vmatpush.msra.mxu0 %v76
    %220 = vmatpush.msra.mxu0 %v75
    %221 = vmatpush.msra.mxu0 %v74
    %222 = vmatpush.msra.mxu0 %v73
    %223 = vmatpush.msra.mxu0 %v72
    %224 = vmatmul.f32.gmra.mxu0 %v49
    %v225 = vpop.f32.mrf.mxu0
    %v226 = vadd.f32 %v206, %v225
    %227 = vdwg.mxu0
    %228 = vmatpush.msra.mxu0 %v103
    %229 = vmatpush.msra.mxu0 %v102
    %230 = vmatpush.msra.mxu0 %v101
    %231 = vmatpush.msra.mxu0 %v100
    %232 = vmatpush.msra.mxu0 %v99
    %233 = vmatpush.msra.mxu0 %v98
    %234 = vmatpush.msra.mxu0 %v97
    %235 = vmatpush.msra.mxu0 %v96
    %236 = vmatpush.msra.mxu0 %v95
    %237 = vmatpush.msra.mxu0 %v94
    %238 = vmatpush.msra.mxu0 %v93
    %239 = vmatpush.msra.mxu0 %v92
    %240 = vmatpush.msra.mxu0 %v91
    %241 = vmatpush.msra.mxu0 %v90
    %242 = vmatpush.msra.mxu0 %v89
    %243 = vmatpush.msra.mxu0 %v88
    %244 = vmatmul.f32.gmra.mxu0 %v50
    %v245 = vpop.f32.mrf.mxu0
    %v246 = vadd.f32 %v226, %v245
    %247 = vdwg.mxu0
    %248 = vmatpush.msra.mxu0 %v119
    %249 = vmatpush.msra.mxu0 %v118
    %250 = vmatpush.msra.mxu0 %v117
    %251 = vmatpush.msra.mxu0 %v116
    %252 = vmatpush.msra.mxu0 %v115
    %253 = vmatpush.msra.mxu0 %v114
    %254 = vmatpush.msra.mxu0 %v113
    %255 = vmatpush.msra.mxu0 %v112
    %256 = vmatpush.msra.mxu0 %v111
    %257 = vmatpush.msra.mxu0 %v110
    %258 = vmatpush.msra.mxu0 %v109
    %259 = vmatpush.msra.mxu0 %v108
    %260 = vmatpush.msra.mxu0 %v107
    %261 = vmatpush.msra.mxu0 %v106
    %262 = vmatpush.msra.mxu0 %v105
    %263 = vmatpush.msra.mxu0 %v104
    %264 = vmatmul.f32.gmra.mxu0 %v51
    %v265 = vpop.f32.mrf.mxu0
    %v266 = vadd.f32 %v246, %v265
    %267 = vdwg.mxu0
    %268 = vmatpush.msra.mxu0 %v135
    %269 = vmatpush.msra.mxu0 %v134
    %270 = vmatpush.msra.mxu0 %v133
    %271 = vmatpush.msra.mxu0 %v132
    %272 = vmatpush.msra.mxu0 %v131
    %273 = vmatpush.msra.mxu0 %v130
    %274 = vmatpush.msra.mxu0 %v129
    %275 = vmatpush.msra.mxu0 %v128
    %276 = vmatpush.msra.mxu0 %v127
    %277 = vmatpush.msra.mxu0 %v126
    %278 = vmatpush.msra.mxu0 %v125
    %279 = vmatpush.msra.mxu0 %v124
    %280 = vmatpush.msra.mxu0 %v123
    %281 = vmatpush.msra.mxu0 %v122
    %282 = vmatpush.msra.mxu0 %v121
    %283 = vmatpush.msra.mxu0 %v120
    %284 = vmatmul.f32.gmra.mxu0 %v52
    %v285 = vpop.f32.mrf.mxu0
    %v286 = vadd.f32 %v266, %v285
    %287 = vdwg.mxu0
    %288 = vmatpush.msra.mxu0 %v151
    %289 = vmatpush.msra.mxu0 %v150
    %290 = vmatpush.msra.mxu0 %v149
    %291 = vmatpush.msra.mxu0 %v148
    %292 = vmatpush.msra.mxu0 %v147
    %293 = vmatpush.msra.mxu0 %v146
    %294 = vmatpush.msra.mxu0 %v145
    %295 = vmatpush.msra.mxu0 %v144
    %296 = vmatpush.msra.mxu0 %v143
    %297 = vmatpush.msra.mxu0 %v142
    %298 = vmatpush.msra.mxu0 %v141
    %299 = vmatpush.msra.mxu0 %v140
    %300 = vmatpush.msra.mxu0 %v139
    %301 = vmatpush.msra.mxu0 %v138
    %302 = vmatpush.msra.mxu0 %v137
    %303 = vmatpush.msra.mxu0 %v136
    %304 = vmatmul.f32.gmra.mxu0 %v53
    %v305 = vpop.f32.mrf.mxu0
    %v306 = vadd.f32 %v286, %v305
    %307 = vdwg.mxu0
    %308 = vmatpush.msra.mxu0 %v167
    %309 = vmatpush.msra.mxu0 %v166
    %310 = vmatpush.msra.mxu0 %v165
    %311 = vmatpush.msra.mxu0 %v164
    %312 = vmatpush.msra.mxu0 %v163
    %313 = vmatpush.msra.mxu0 %v162
    %314 = vmatpush.msra.mxu0 %v161
    %315 = vmatpush.msra.mxu0 %v160
    %316 = vmatpush.msra.mxu0 %v159
    %317 = vmatpush.msra.mxu0 %v158
    %318 = vmatpush.msra.mxu0 %v157
    %319 = vmatpush.msra.mxu0 %v156
    %320 = vmatpush.msra.mxu0 %v155
    %321 = vmatpush.msra.mxu0 %v154
    %322 = vmatpush.msra.mxu0 %v153
    %323 = vmatpush.msra.mxu0 %v152
    %324 = vmatmul.f32.gmra.mxu0 %v54
    %v325 = vpop.f32.mrf.mxu0
    %v326 = vadd.f32 %v306, %v325
    %327 = vdwg.mxu0
    %328 = vmatpush.msra.mxu0 %v183
    %329 = vmatpush.msra.mxu0 %v182
    %330 = vmatpush.msra.mxu0 %v181
    %331 = vmatpush.msra.mxu0 %v180
    %332 = vmatpush.msra.mxu0 %v179
    %333 = vmatpush.msra.mxu0 %v178
    %334 = vmatpush.msra.mxu0 %v177
    %335 = vmatpush.msra.mxu0 %v176
    %336 = vmatpush.msra.mxu0 %v175
    %337 = vmatpush.msra.mxu0 %v174
    %338 = vmatpush.msra.mxu0 %v173
    %339 = vmatpush.msra.mxu0 %v172
    %340 = vmatpush.msra.mxu0 %v171
    %341 = vmatpush.msra.mxu0 %v170
    %342 = vmatpush.msra.mxu0 %v169
    %343 = vmatpush.msra.mxu0 %v168
    %344 = vmatmul.f32.gmra.mxu0 %v55
    %v345 = vpop.f32.mrf.mxu0
    %v346 = vadd.f32 %v326, %v345
    %347 = vdwg.mxu0
    %v348 = vsub.f32 0.0, %v346
    %v349 = vmul.f32 %v348, 1.442695
    %v350 = vpow.pop %v349
    %v351 = vadd.f32 %v350, 1.0
    %v352 = vrcp.pop %v351
    %v353 = vmul.f32 %v351, %v352
    %v354 = vsub.f32 1.0, %v353
    %v355 = vmul.f32 %v352, %v354
    %v356 = vadd.f32 %v352, %v355
    %vm357 = vweird.f32 %v351
    %vm358 = vweird.f32 %v352
    %vm359 = vmor %vm357, %vm358
    %v360 = vsel %vm359, %v352, %v356
    %v361 = vand.u32 2147483647, %v351
    %vm362 = vcmp.eq.f32.partialorder %v361, 8.507059e+37
    %v363 = vand.u32 %v351, 2147483648
    %v364 = vor.u32 1.1754944e-38, %v363
    %v365 = vsel %vm362, %v364, %v360
    %v366 = vmul.f32 1.0, %v365
    %v367 = vsub.f32 %v366, 0.5
    %v368 = vmax.f32 %v367, 0.0
    %v369 = vld [vmem:[%s3] sm:$0x1]
    %371 = vset.pattern.permute.xlu0 10
    %372 = vperm.xlu0 %371, %v368
    %v373 = vpop.permute.xlu0 %372
    %v376 = vperm.slane %v369, 0
    %v378 = vmul.f32 %v373, %v376
    %v379 = vadd.f32 %v346, %v378
    %380 = vst [vmem:[#allocation7] sm:$0xff] %v379
    // Predicated region
    $region26: #{tpu_custom_call.1} parent=1 // pred_check
      _
    $region27: #{tpu_custom_call.1} parent=1 // pred_check_branch
      %382 = sbr.rel (0) target = $region29
    $region28: #{tpu_custom_call.1} parent=1 // pred_region
      %384 = vsyncadd [#allocation4], 0
      %s386 = sshll.u32 [#allocation7], 4
      %s387 = int_to_ptr.vmem [resolvable:$true] %s386
      %s388 = sshll.u32 %s4, 4
      %s389 = int_to_ptr.hbm [resolvable:$true] %s388
      %391 = dma.vmem_to_hbm [thread:$0]  %s387, 128, %s389, [#allocation4]
    $region29: #{tpu_custom_call.1} parent=1 // pred_fallthru
      _
    // Predicated region
    $region30: #{tpu_custom_call.1} parent=1 // pred_check
      _
    $region31: #{tpu_custom_call.1} parent=1 // pred_check_branch
      %393 = sbr.rel (0) target = $region33
    $region32: #{tpu_custom_call.1} parent=1 // pred_region
      %395 = dma.done [#allocation4], 128
    $region33: #{tpu_custom_call.1} parent=1 // pred_fallthru
      _
    %396 = vsyncpa [#allocation3], 1
    %397 = vsyncpa [#allocation6], 1
    %398 = vsyncpa [#allocation4], 1

</llo_original>
